<compile_context>
chip_gen: v7x
topology: tpu7x:2x2x1
jax: 0.10.0
libtpu: 0.0.40
codegen_flags: <defaults>
</compile_context>

<pallas_src>
import jax
import jax.numpy as jnp
from jax.experimental import pallas as pl
from jax.experimental.pallas import tpu as pltpu


def _denorm_kernel(x_ref, mean_ref, std_ref, o_ref):
    # x_ref / o_ref : (R, T) tiles in VMEM.
    # mean_ref / std_ref : (R, 1) f32 tiles in VMEM, broadcast over lanes.
    x = x_ref[...].astype(jnp.float32)
    o_ref[...] = (x * std_ref[...] + mean_ref[...]).astype(o_ref.dtype)


def _choose_tiles(nc: int, hw: int, itemsize: int):
    """Pick (rows, lanes) block shape targeting ~1 MiB per input buffer."""
    # Lane tile: large multiple of 128 (lane-dense), capped at 64K elements,
    # or the full HW extent (always legal) when HW is small.
    max_lane_elems = 64 * 1024  # 512 * 128
    t = hw if hw <= max_lane_elems else max_lane_elems
    # Row tile: ~1 MiB per input buffer, snapped to the sublane packing unit
    # (8 for f32, 16 for bf16/f16, 32 for 8-bit dtypes). Full NC is always legal.
    target_bytes = 1 << 20
    sub = 8 * max(1, 4 // itemsize)
    r = max(1, target_bytes // max(1, t * itemsize))
    if r >= nc:
        r = nc
    else:
        r = max(sub, (r // sub) * sub)
        if r >= nc:
            r = nc
    return r, t


def denormalize_pallas(x: jax.Array, mean, std) -> jax.Array:
    """x: (C, H, W) or (*, C, H, W); mean/std: scalar, (C,), or (*, C)."""
    orig_shape = x.shape
    if x.ndim == 3:
        x4 = x[None]
    elif x.ndim >= 4:
        x4 = x.reshape((-1,) + x.shape[-3:])
    else:
        raise ValueError(f"expected (C,H,W) or (*,C,H,W), got {x.shape}")

    N, C, H, W = x4.shape
    NC, HW = N * C, H * W

    mean = jnp.asarray(mean, dtype=jnp.float32)
    std = jnp.asarray(std, dtype=jnp.float32)

    def _per_row(p):
        # scalar / (1,) -> same value for all rows; (C,) -> tiled over batch;
        # (*, C) -> flattened and broadcast against (N, C).
        if p.ndim == 0 or p.size == 1:
            return jnp.broadcast_to(p.reshape(()), (NC,))
        if p.ndim == 1:
            return jnp.broadcast_to(p.reshape(1, C), (N, C)).reshape(NC)
        return jnp.broadcast_to(p.reshape(-1, C), (N, C)).reshape(NC)

    mean_rows = _per_row(mean).reshape(NC, 1)
    std_rows = _per_row(std).reshape(NC, 1)

    # Lane-dense, contiguous reshape (free).
    x2 = x4.reshape(NC, HW)
    itemsize = x2.dtype.itemsize
    r, t = _choose_tiles(NC, HW, itemsize)
    grid = (pl.cdiv(NC, r), pl.cdiv(HW, t))

    nbytes = NC * HW * itemsize
    out2 = pl.pallas_call(
        _denorm_kernel,
        out_shape=jax.ShapeDtypeStruct((NC, HW), x2.dtype),
        grid=grid,
        in_specs=[
            pl.BlockSpec((r, t), lambda i, j: (i, j)),   # x tile
            pl.BlockSpec((r, 1), lambda i, j: (i, 0)),   # mean rows (f32, VMEM)
            pl.BlockSpec((r, 1), lambda i, j: (i, 0)),   # std rows  (f32, VMEM)
        ],
        out_specs=pl.BlockSpec((r, t), lambda i, j: (i, j)),
        compiler_params=pltpu.CompilerParams(
            dimension_semantics=("parallel", "parallel"),
        ),
        cost_estimate=pl.CostEstimate(
            flops=2 * NC * HW,
            transcendentals=0,
            bytes_accessed=2 * nbytes + 2 * NC * 4,
        ),
    )(x2, mean_rows, std_rows)

    return out2.reshape(orig_shape)


class Denormalize:
    """JAX/Pallas port of kornia.enhance.Denormalize."""

    def __init__(self, mean, std):
        self.mean = mean
        self.std = std

    def __call__(self, x: jax.Array) -> jax.Array:
        return denormalize_pallas(x, self.mean, self.std)

    def __repr__(self):
        return f"{self.__class__.__name__}(mean={self.mean}, std={self.std})"


if __name__ == "__main__":
    key = jax.random.PRNGKey(0)
    N, C, H, W = 2, 4, 16, 16
    kx, km, ks = jax.random.split(key, 3)

    x = jax.random.normal(kx, (N, C, H, W), dtype=jnp.float32)
    mean = jax.random.normal(km, (C,), dtype=jnp.float32)
    std = jax.random.uniform(ks, (C,), dtype=jnp.float32, minval=0.5, maxval=2.0)

    module = Denormalize(mean, std)
    out = jax.block_until_ready(module(x))

    # Reference check (plain JAX), matching kornia: out = x * std[c] + mean[c].
    ref = x * std[None, :, None, None] + mean[None, :, None, None]
    assert out.shape == x.shape and out.dtype == x.dtype
    assert jnp.allclose(out, ref, atol=1e-6, rtol=1e-6)

    print("KERNEL_OK")
</pallas_src>

<mosaic_0001>
module attributes {stable_mosaic.version = 11 : i64} {
  func.func @_denorm_kernel(%arg0: i32, %arg1: i32, %arg2: memref<8x256xf32, #tpu.memory_space<vmem>>, %arg3: memref<8x1xf32, #tpu.memory_space<vmem>>, %arg4: memref<8x1xf32, #tpu.memory_space<vmem>>, %arg5: memref<8x256xf32, #tpu.memory_space<vmem>>) attributes {dimension_semantics = [#tpu.dimension_semantics<parallel>, #tpu.dimension_semantics<parallel>], iteration_bounds = array<i64: 1, 1>, scalar_prefetch = 0 : i64, scratch_operands = 0 : i64, tpu.core_type = #tpu.core_type<tc>, window_params = [{transform_indices = @transform_0, window_bounds = array<i64: 8, 256>}, {transform_indices = @transform_1, window_bounds = array<i64: 8, 1>}, {transform_indices = @transform_2, window_bounds = array<i64: 8, 1>}, {transform_indices = @transform_3, window_bounds = array<i64: 8, 256>}]} {
    %c0 = arith.constant 0 : index
    %c0_0 = arith.constant 0 : index
    %0 = vector.load %arg2[%c0, %c0_0] : memref<8x256xf32, #tpu.memory_space<vmem>>, vector<8x256xf32>
    %c0_1 = arith.constant 0 : index
    %c0_2 = arith.constant 0 : index
    %1 = vector.load %arg4[%c0_1, %c0_2] : memref<8x1xf32, #tpu.memory_space<vmem>>, vector<8x1xf32>
    %2 = vector.broadcast %1 : vector<8x1xf32> to vector<8x256xf32>
    %3 = arith.mulf %0, %2 : vector<8x256xf32>
    %c0_3 = arith.constant 0 : index
    %c0_4 = arith.constant 0 : index
    %4 = vector.load %arg3[%c0_3, %c0_4] : memref<8x1xf32, #tpu.memory_space<vmem>>, vector<8x1xf32>
    %5 = vector.broadcast %4 : vector<8x1xf32> to vector<8x256xf32>
    %6 = arith.addf %3, %5 : vector<8x256xf32>
    %c0_5 = arith.constant 0 : index
    %c0_6 = arith.constant 0 : index
    %7 = vector.load %arg5[%c0_5, %c0_6] : memref<8x256xf32, #tpu.memory_space<vmem>>, vector<8x256xf32>
    tpu.vector_store %arg5[%c0_5, %c0_6], %6 {strides = array<i32>} : memref<8x256xf32, #tpu.memory_space<vmem>>, vector<8x256xf32>,
    return
  }
  func.func @transform_0(%arg0: i32, %arg1: i32) -> (i32, i32) {
    %c0_i32 = arith.constant 0 : i32
    return %arg0, %arg1 : i32, i32
  }
  func.func @transform_1(%arg0: i32, %arg1: i32) -> (i32, i32) {
    %c0_i32 = arith.constant 0 : i32
    %c0_i32_0 = arith.constant 0 : i32
    return %arg0, %c0_i32 : i32, i32
  }
  func.func @transform_2(%arg0: i32, %arg1: i32) -> (i32, i32) {
    %c0_i32 = arith.constant 0 : i32
    %c0_i32_0 = arith.constant 0 : i32
    return %arg0, %c0_i32 : i32, i32
  }
  func.func @transform_3(%arg0: i32, %arg1: i32) -> (i32, i32) {
    %c0_i32 = arith.constant 0 : i32
    return %arg0, %arg1 : i32, i32
  }
}

</mosaic_0001>

<llo_original>
// kernel: tpu_custom_call.1
$region0: #{tpu_custom_call.1}
  #allocation0 [shape = 'u32[]', space=smem, size = 0x4, offset = 0x4, fixed_abs, tag = 'smem constant byte address 0x4 - core index']
  #allocation1 [shape = 'u32[144,128]{1,0:T(1,128)}', space=vmem, size = 0x12000, scoped, tag = 'internal scratch']
  %s0 = inlined_call_operand.vmem [shape: f32[8,256], index: 0, kind: input, shape index: {}]
  %s1 = inlined_call_operand.vmem [shape: f32[8,1], index: 1, kind: input, shape index: {}]
  %s2 = inlined_call_operand.vmem [shape: f32[8,1], index: 2, kind: input, shape index: {}]
  %s3 = inlined_call_operand.hbm [shape: f32[8,256], index: 3, kind: output, shape index: {}]
  %s4 = sld [smem:[#allocation0]]
  $region22: #{tpu_custom_call.1} parent=0
    _
  %s6 = ssub.s32 1, %s4
  %s7 = scalar_select 0, %s6, %s4
  $region1: #{tpu_custom_call.1} parent=0
    #allocation2 [shape = 'u8[8192]{0}', space=vmem, size = 0x2000, scoped, tag = 'output window, operand 0, single buffered']
    #allocation3 [shape = 's32[1]{0}', space=sflag, size = 0x4, scoped, tag = 'scoped memory for tpu_custom_call.1']
    %8 = vsyncpa [#allocation3], 0
    // Predicated region
    $region2: #{tpu_custom_call.1} parent=1 // pred_check
      _
    $region3: #{tpu_custom_call.1} parent=1 // pred_check_branch
      %10 = sbr.rel (0) target = $region5
    $region4: #{tpu_custom_call.1} parent=1 // pred_region
      _
    $region5: #{tpu_custom_call.1} parent=1 // pred_fallthru
      _
    // Predicated region
    $region6: #{tpu_custom_call.1} parent=1 // pred_check
      _
    $region7: #{tpu_custom_call.1} parent=1 // pred_check_branch
      %12 = sbr.rel (0) target = $region9
    $region8: #{tpu_custom_call.1} parent=1 // pred_region
      _
    $region9: #{tpu_custom_call.1} parent=1 // pred_fallthru
      _
    // Predicated region
    $region10: #{tpu_custom_call.1} parent=1 // pred_check
      _
    $region11: #{tpu_custom_call.1} parent=1 // pred_check_branch
      %14 = sbr.rel (0) target = $region13
    $region12: #{tpu_custom_call.1} parent=1 // pred_region
      _
    $region13: #{tpu_custom_call.1} parent=1 // pred_fallthru
      _
    %v15 = vld [vmem:[%s0] sm:$0xff]
    %v16 = vld [vmem:[%s0 + $0x8] sm:$0xff]
    %v17 = vld [vmem:[%s2] sm:$0xff]
    %19 = vset.pattern.permute.xlu0 0
    %20 = vperm.xlu0 %19, %v17
    %v21 = vpop.permute.xlu0 %20
    %v23 = vmul.f32 %v15, %v21
    %v24 = vmul.f32 %v16, %v21
    %v25 = vld [vmem:[%s1] sm:$0xff]
    %27 = vset.pattern.permute.xlu0 0
    %28 = vperm.xlu0 %27, %v25
    %v29 = vpop.permute.xlu0 %28
    %v31 = vadd.f32 %v23, %v29
    %v32 = vadd.f32 %v24, %v29
    %33 = vst [vmem:[#allocation2] sm:$0xff] %v31
    %34 = vst [vmem:[#allocation2 + $0x8] sm:$0xff] %v32
    // Predicated region
    $region14: #{tpu_custom_call.1} parent=1 // pred_check
      _
    $region15: #{tpu_custom_call.1} parent=1 // pred_check_branch
      %36 = sbr.rel (0) target = $region17
    $region16: #{tpu_custom_call.1} parent=1 // pred_region
      %s38 = ssub.s32 256, 256
      %39 = vsyncadd [#allocation3], %s38
      %s41 = sshll.u32 [#allocation2], 4
      %s42 = int_to_ptr.vmem [resolvable:$true] %s41
      %44 = dma.vmem_to_hbm [thread:$0]  %s42, 256, %s3, [#allocation3]
    $region17: #{tpu_custom_call.1} parent=1 // pred_fallthru
      _
    // Predicated region
    $region18: #{tpu_custom_call.1} parent=1 // pred_check
      _
    $region19: #{tpu_custom_call.1} parent=1 // pred_check_branch
      %46 = sbr.rel (0) target = $region21
    $region20: #{tpu_custom_call.1} parent=1 // pred_region
      %47 = dma.done [#allocation3], 256
    $region21: #{tpu_custom_call.1} parent=1 // pred_fallthru
      _
    %48 = vsyncpa [#allocation3], 1

</llo_original>
